<compile_context>
chip_gen: v5e
topology: v5e:2x2
jax: 0.10.0
libtpu: 0.0.40
codegen_flags: <defaults>
</compile_context>

<pallas_src>
import functools

import jax
import jax.numpy as jnp
import numpy as np
from jax import lax
from jax.experimental import pallas as pl
from jax.experimental.pallas import tpu as pltpu

# NOTE: matches the tutorial-style LayerNormalization default (eps=1e-6);
# PyTorch nn.LayerNorm would use 1e-5.
EPS = 1e-6


def _round_up(x, m):
    return (x + m - 1) // m * m


@functools.lru_cache(maxsize=None)
def _vmem_budget():
    """Generation-aware (working_set, compiler_limit) VMEM budgets in bytes."""
    cap = 64 * 1024 * 1024  # conservative default = v7x per-core VMEM
    try:
        info = pltpu.get_tpu_info()
        reported = int(getattr(info, "vmem_capacity_bytes", 0) or 0)
        if reported > 0:
            cap = reported
    except Exception:
        pass
    cap = max(32 * 1024 * 1024, min(cap, 128 * 1024 * 1024))
    working = int(cap * 0.60)   # ~38 MiB on v7x, ~76 MiB on v5e/v6e
    limit = int(cap * 0.75)     # ~48 MiB on v7x, ~96 MiB on v5e/v6e
    return working, limit


def _pick_tile_rows(rows, per_row_bytes, *, budget, reserved_bytes=0,
                    row_mult=8, max_rows=1024, min_grid_steps=1):
    """Largest row tile (multiple of row_mult) whose working set fits `budget`,
    capped so the grid keeps >= min_grid_steps steps (megacore has work to shard)."""
    rows = int(rows)
    if rows < row_mult:
        return rows                     # block == full dim (allowed by the (8,128) rule)
    avail = max(int(budget) - int(reserved_bytes), 1 << 20)
    tm = avail // max(int(per_row_bytes), 1)
    tm = min(int(tm), int(max_rows), rows)
    if min_grid_steps > 1:
        tm = min(tm, -(-rows // min_grid_steps))
    return max(row_mult, (tm // row_mult) * row_mult)


# ---------------------- stateless dropout mask (no pltpu.prng_*) ----------------------
def _hash_u32(x):
    # murmur3-style finalizer: uniform-ish uint32 from a uint32 index.
    x = x ^ (x >> jnp.uint32(16))
    x = x * jnp.uint32(0x7FEB352D)
    x = x ^ (x >> jnp.uint32(15))
    x = x * jnp.uint32(0x846CA68B)
    x = x ^ (x >> jnp.uint32(16))
    return x


def _keep_mask(seed_u32, row0, n_cols, shape, drop_thresh_24):
    """Keep-mask keyed only on (seed, global flat element index): grid/tile invariant.
    Threshold compare is done in the integer domain (top 24 bits of the hash)."""
    rows = lax.broadcasted_iota(jnp.int32, shape, 0).astype(jnp.uint32)
    cols = lax.broadcasted_iota(jnp.int32, shape, 1).astype(jnp.uint32)
    row0_u = jnp.asarray(row0).astype(jnp.uint32)
    idx = (rows + row0_u) * jnp.uint32(n_cols) + cols        # uint32: wraps, no overflow
    u = _hash_u32(idx ^ (seed_u32 * jnp.uint32(0x9E3779B9)))
    u24 = (u >> jnp.uint32(8)).astype(jnp.int32)             # top 24 bits, fits int32
    return u24 >= drop_thresh_24


def _apply_dropout(y_f32, seed_ref, row0, n_cols, drop_p):
    """Static (trace-time) branch on drop_p: no PRNG work at all when drop_p == 0."""
    if drop_p >= 1.0:
        return jnp.zeros_like(y_f32)
    if drop_p > 0.0:
        thresh = jnp.int32(min(int(round(drop_p * (1 << 24))), (1 << 24) - 1))
        keep = _keep_mask(seed_ref[0].astype(jnp.uint32), row0, n_cols,
                          y_f32.shape, thresh)
        return jnp.where(keep, y_f32 * jnp.float32(1.0 / (1.0 - drop_p)), 0.0)
    return y_f32


# ---------------- Kernel A: fused LayerNorm + Linear + dropout + residual ----------------
def _fused_kernel(seed_ref, gamma_ref, beta_ref, w_ref, b_ref, x_ref, o_ref, *,
                  drop_p, tile_rows, n_cols):
    # LayerNorm prologue in f32.
    x32 = x_ref[...].astype(jnp.float32)                              # (tm, D)
    mean = jnp.mean(x32, axis=-1, keepdims=True)
    centered = x32 - mean
    var = jnp.mean(centered * centered, axis=-1, keepdims=True)
    normed = centered * lax.rsqrt(var + EPS)
    normed = (normed * gamma_ref[...].astype(jnp.float32)
              + beta_ref[...].astype(jnp.float32))
    # bf16 MXU matmul with f32 accumulation (w_ref is shipped as bf16).
    y = jnp.dot(normed.astype(w_ref.dtype), w_ref[...],
                preferred_element_type=jnp.float32)                   # (tm, N)
    y = y + b_ref[...].astype(jnp.float32)
    dropped = _apply_dropout(y, seed_ref, pl.program_id(0) * tile_rows,
                             n_cols, drop_p)
    # Re-read x (native dtype) for the residual add instead of keeping the f32
    # upcast live across the MXU section (less vreg/VMEM pressure at big tiles).
    o_ref[...] = (x_ref[...].astype(jnp.float32) + dropped).astype(o_ref.dtype)


def fused_residual_linear_2d(x2d, gamma, beta, W, b, *, drop_p, seed):
    R, D = x2d.shape
    Dk, N = W.shape
    assert Dk == D and N == D, "residual add requires prev_layer output dim == d_model"
    working, limit = _vmem_budget()
    itemsize = jnp.dtype(x2d.dtype).itemsize

    Wb = W.astype(jnp.bfloat16)               # native bf16 MXU path, f32 accumulation
    b2 = jnp.asarray(b).reshape(1, N)

    # Per-row working set: x/out double-buffered (native dtype), f32 LN temps + bf16
    # normed copy on D, f32 matmul result + dropout temps on N.
    per_row = D * (2 * itemsize + 12 + 2) + N * (2 * itemsize + 8)
    # Resident operands (constant index_map): W double-buffered + (8,128)-padded vectors.
    vec_pad = 8 * _round_up(max(D, N), 128) * 4
    reserved = 2 * (_round_up(D, 16) * _round_up(N, 128) * 2) + 3 * 2 * vec_pad

    # If the resident weight leaves no room for reasonable row tiles (large d_model,
    # worst on v7x's 64 MiB VMEM), fall back to the unfused 3-stage path.
    # TODO(synk): tile W over (n, k) grid axes with an f32 accumulator scratch
    # (pl.when init/finalize) to keep the single-HBM-pass structure for large d_model,
    # and single-buffer the resident operands via pipeline_mode=pl.Buffered(1).
    if reserved + 64 * per_row > working:
        normed = layernorm_pallas(x2d, gamma, beta)
        y = (jnp.dot(normed.astype(jnp.bfloat16), Wb,
                     preferred_element_type=jnp.float32)
             + b2.astype(jnp.float32)).astype(x2d.dtype)
        return dropout_add_pallas(x2d, y, drop_p=drop_p, seed=seed)

    # MXU-friendly row tiles for large row counts; >=4 grid steps for megacore.
    row_mult = 256 if R >= 2048 else (128 if R >= 256 else 8)
    tile_rows = _pick_tile_rows(R, per_row, budget=working, reserved_bytes=reserved,
                                row_mult=row_mult, max_rows=1024, min_grid_steps=4)
    seed_arr = jnp.asarray([seed], dtype=jnp.int32)

    kernel = functools.partial(_fused_kernel, drop_p=float(drop_p),
                               tile_rows=tile_rows, n_cols=N)
    grid_spec = pltpu.PrefetchScalarGridSpec(
        num_scalar_prefetch=1,
        grid=(pl.cdiv(R, tile_rows),),        # ragged last tile handled by Pallas masking
        in_specs=[
            pl.BlockSpec((1, D), lambda i, s: (0, 0)),           # gamma (resident)
            pl.BlockSpec((1, D), lambda i, s: (0, 0)),           # beta  (resident)
            pl.BlockSpec((D, N), lambda i, s: (0, 0)),           # W     (resident, bf16)
            pl.BlockSpec((1, N), lambda i, s: (0, 0)),           # bias  (resident)
            pl.BlockSpec((tile_rows, D), lambda i, s: (i, 0)),   # x rows
        ],
        out_specs=pl.BlockSpec((tile_rows, N), lambda i, s: (i, 0)),
    )
    return pl.pallas_call(
        kernel,
        out_shape=jax.ShapeDtypeStruct((R, N), x2d.dtype),
        grid_spec=grid_spec,
        compiler_params=pltpu.CompilerParams(
            dimension_semantics=("parallel",),
            vmem_limit_bytes=limit),
    )(seed_arr, gamma, beta, Wb, b2, x2d)


# ------------------------------ Kernel B: LayerNorm ------------------------------
def _layernorm_kernel(gamma_ref, beta_ref, x_ref, o_ref):
    x = x_ref[...].astype(jnp.float32)                               # (tm, D)
    mean = jnp.mean(x, axis=-1, keepdims=True)
    centered = x - mean
    var = jnp.mean(centered * centered, axis=-1, keepdims=True)
    y = centered * lax.rsqrt(var + EPS)
    y = y * gamma_ref[...].astype(jnp.float32) + beta_ref[...].astype(jnp.float32)
    o_ref[...] = y.astype(o_ref.dtype)


def layernorm_pallas(x2d, gamma, beta):
    R, D = x2d.shape
    working, limit = _vmem_budget()
    itemsize = jnp.dtype(x2d.dtype).itemsize
    per_row = D * (4 * itemsize + 12)        # x/out double-buffered + f32 temps
    tile_rows = _pick_tile_rows(R, per_row, budget=working, row_mult=8,
                                max_rows=2048, min_grid_steps=4)
    return pl.pallas_call(
        _layernorm_kernel,
        out_shape=jax.ShapeDtypeStruct((R, D), x2d.dtype),
        grid=(pl.cdiv(R, tile_rows),),
        in_specs=[
            pl.BlockSpec((1, D), lambda i: (0, 0)),              # gamma (resident)
            pl.BlockSpec((1, D), lambda i: (0, 0)),              # beta  (resident)
            pl.BlockSpec((tile_rows, D), lambda i: (i, 0)),      # x rows
        ],
        out_specs=pl.BlockSpec((tile_rows, D), lambda i: (i, 0)),
        compiler_params=pltpu.CompilerParams(
            dimension_semantics=("parallel",),
            vmem_limit_bytes=limit),
    )(gamma, beta, x2d)


# ------------------------ Kernel C: dropout + residual add ------------------------
def _dropout_add_kernel(seed_ref, x_ref, y_ref, o_ref, *, drop_p, tile_rows, n_cols):
    dropped = _apply_dropout(y_ref[...].astype(jnp.float32), seed_ref,
                             pl.program_id(0) * tile_rows, n_cols, drop_p)
    o_ref[...] = (x_ref[...].astype(jnp.float32) + dropped).astype(o_ref.dtype)


def _pick_lane_width(total, d):
    if d % 128 == 0:
        return d                              # already lane-dense
    for w in (1024, 512, 256, 128):           # purely elementwise -> free to reshape
        if total % w == 0:
            return w
    return d


def dropout_add_pallas(x2d, y2d, *, drop_p, seed):
    R, D = x2d.shape
    total = R * D
    w = _pick_lane_width(total, D)            # lane-dense view; row-major reshape keeps
    xv = x2d.reshape(total // w, w)           # flat indices, so the mask is unchanged
    yv = y2d.reshape(total // w, w)
    rows = xv.shape[0]
    working, limit = _vmem_budget()
    itemsize = jnp.dtype(x2d.dtype).itemsize
    per_row = w * (6 * itemsize + 16)         # 3 streams double-buffered + f32 temps
    tile_rows = _pick_tile_rows(rows, per_row, budget=working, row_mult=8,
                                max_rows=2048, min_grid_steps=4)
    seed_arr = jnp.asarray([seed], dtype=jnp.int32)

    kernel = functools.partial(_dropout_add_kernel, drop_p=float(drop_p),
                               tile_rows=tile_rows, n_cols=w)
    grid_spec = pltpu.PrefetchScalarGridSpec(
        num_scalar_prefetch=1,
        grid=(pl.cdiv(rows, tile_rows),),
        in_specs=[
            pl.BlockSpec((tile_rows, w), lambda i, s: (i, 0)),   # x (residual)
            pl.BlockSpec((tile_rows, w), lambda i, s: (i, 0)),   # y = prev_layer(norm(x))
        ],
        out_specs=pl.BlockSpec((tile_rows, w), lambda i, s: (i, 0)),
    )
    out = pl.pallas_call(
        kernel,
        out_shape=jax.ShapeDtypeStruct((rows, w), x2d.dtype),
        grid_spec=grid_spec,
        compiler_params=pltpu.CompilerParams(
            dimension_semantics=("parallel",),
            vmem_limit_bytes=limit),
    )(seed_arr, xv, yv)
    return out.reshape(R, D)


# --------------------------------- Module wrappers ---------------------------------
def residual_forward(x, prev_layer_fn, gamma, beta, *, drop_p, seed):
    """General path: x + dropout(prev_layer(layernorm(x))) for any prev_layer callable."""
    B, S, D = x.shape
    x2 = x.reshape(B * S, D)
    normed = layernorm_pallas(x2, gamma, beta)
    y = prev_layer_fn(normed.reshape(B, S, D)).reshape(B * S, D)
    out = dropout_add_pallas(x2, y, drop_p=drop_p, seed=seed)
    return out.reshape(B, S, D)


def residual_forward_fused_linear(x, W, b, gamma, beta, *, drop_p, seed):
    """Fused path when prev_layer is a Linear(d_model -> d_model): one HBM round-trip."""
    B, S, D = x.shape
    x2 = x.reshape(B * S, D)
    out = fused_residual_linear_2d(x2, gamma, beta, W, jnp.asarray(b).reshape(1, -1),
                                   drop_p=drop_p, seed=seed)
    return out.reshape(B, S, D)


if __name__ == "__main__":
    drop_p = 0.1
    seed = 1234

    key = jax.random.PRNGKey(0)
    kx, kw, kb, kx2 = jax.random.split(key, 4)

    B, S, D = 2, 8, 32
    x = jax.random.normal(kx, (B, S, D), dtype=jnp.float32)

    # LayerNormalization parameters (deterministic init: ones / zeros).
    gamma = jnp.ones((1, D), dtype=jnp.float32)
    beta = jnp.zeros((1, D), dtype=jnp.float32)

    # prev_layer: a deterministic Linear(D, D).
    W = jax.random.normal(kw, (D, D), dtype=jnp.float32) * (1.0 / np.sqrt(D))
    b = jax.random.normal(kb, (D,), dtype=jnp.float32) * 0.01

    def prev_layer_fn(h):
        return jnp.dot(h, W) + b

    def ref_no_dropout(xx):
        mean = jnp.mean(xx, axis=-1, keepdims=True)
        var = jnp.mean((xx - mean) ** 2, axis=-1, keepdims=True)
        normed = (xx - mean) * lax.rsqrt(var + EPS) * gamma[0] + beta[0]
        return xx + prev_layer_fn(normed)

    # Fused Linear path, dropout on.
    out_fused = residual_forward_fused_linear(
        x, W, b, gamma, beta, drop_p=drop_p, seed=seed)
    out_fused = jax.block_until_ready(out_fused)
    assert out_fused.shape == (B, S, D) and out_fused.dtype == x.dtype

    # Fused Linear path, dropout off -> matches reference (bf16 MXU tolerance).
    out_fused_nd = residual_forward_fused_linear(
        x, W, b, gamma, beta, drop_p=0.0, seed=0)
    np.testing.assert_allclose(np.asarray(out_fused_nd), np.asarray(ref_no_dropout(x)),
                               rtol=2e-2, atol=2e-2)

    # General path (arbitrary prev_layer callable), dropout off (exact f32 matmul).
    out_general_nd = residual_forward(
        x, prev_layer_fn, gamma, beta, drop_p=0.0, seed=0)
    np.testing.assert_allclose(np.asarray(out_general_nd), np.asarray(ref_no_dropout(x)),
                               rtol=1e-5, atol=1e-5)

    # Ragged row count (batch*seq not a multiple of the row tile) exercises the
    # cdiv-grid masked boundary handling that replaced the old pad/slice round-trip.
    Sr = 9
    xr = jax.random.normal(kx2, (B, Sr, D), dtype=jnp.float32)
    out_r_fused = residual_forward_fused_linear(
        xr, W, b, gamma, beta, drop_p=0.0, seed=0)
    np.testing.assert_allclose(np.asarray(out_r_fused), np.asarray(ref_no_dropout(xr)),
                               rtol=2e-2, atol=2e-2)
    out_r_gen = residual_forward(
        xr, prev_layer_fn, gamma, beta, drop_p=0.0, seed=0)
    np.testing.assert_allclose(np.asarray(out_r_gen), np.asarray(ref_no_dropout(xr)),
                               rtol=1e-5, atol=1e-5)

    # Dropout sanity: dropped elements leave the residual untouched (out == x);
    # the dropped fraction should be near drop_p (very loose bound, 512 elements).
    frac_dropped = float(jnp.mean((out_fused == x).astype(jnp.float32)))
    assert 0.0 < frac_dropped < 0.35, frac_dropped

    print("KERNEL_OK")
</pallas_src>

<mosaic_0001>
module attributes {stable_mosaic.version = 11 : i64} {
  func.func @_fused_kernel(%arg0: i32, %arg1: memref<1xi32, #tpu.memory_space<smem>>, %arg2: memref<1x32xf32, #tpu.memory_space<vmem>>, %arg3: memref<1x32xf32, #tpu.memory_space<vmem>>, %arg4: memref<32x32xbf16, #tpu.memory_space<vmem>>, %arg5: memref<1x32xf32, #tpu.memory_space<vmem>>, %arg6: memref<8x32xf32, #tpu.memory_space<vmem>>, %arg7: memref<8x32xf32, #tpu.memory_space<vmem>>) attributes {dimension_semantics = [#tpu.dimension_semantics<parallel>], iteration_bounds = array<i64: 2>, scalar_prefetch = 1 : i64, scratch_operands = 0 : i64, tpu.core_type = #tpu.core_type<tc>, window_params = [{pipeline_mode = #tpu.pipeline_mode<synchronous>, transform_indices = @transform_0, window_bounds = array<i64: 1, 32>}, {pipeline_mode = #tpu.pipeline_mode<synchronous>, transform_indices = @transform_1, window_bounds = array<i64: 1, 32>}, {pipeline_mode = #tpu.pipeline_mode<synchronous>, transform_indices = @transform_2, window_bounds = array<i64: 32, 32>}, {pipeline_mode = #tpu.pipeline_mode<synchronous>, transform_indices = @transform_3, window_bounds = array<i64: 1, 32>}, {transform_indices = @transform_4, window_bounds = array<i64: 8, 32>}, {transform_indices = @transform_5, window_bounds = array<i64: 8, 32>}]} {
    %c0 = arith.constant 0 : index
    %c0_0 = arith.constant 0 : index
    %0 = vector.load %arg6[%c0, %c0_0] : memref<8x32xf32, #tpu.memory_space<vmem>>, vector<8x32xf32>
    %cst = arith.constant dense<0.000000e+00> : vector<8xf32>
    %1 = vector.multi_reduction <add>, %0, %cst [1] : vector<8x32xf32> to vector<8xf32>
    %2 = vector.shape_cast %1 : vector<8xf32> to vector<8x1xf32>
    %cst_1 = arith.constant 3.200000e+01 : f32
    %3 = vector.broadcast %cst_1 : f32 to vector<8x1xf32>
    %4 = arith.divf %2, %3 : vector<8x1xf32>
    %5 = vector.broadcast %4 : vector<8x1xf32> to vector<8x32xf32>
    %6 = arith.subf %0, %5 : vector<8x32xf32>
    %7 = arith.mulf %6, %6 : vector<8x32xf32>
    %cst_2 = arith.constant dense<0.000000e+00> : vector<8xf32>
    %8 = vector.multi_reduction <add>, %7, %cst_2 [1] : vector<8x32xf32> to vector<8xf32>
    %9 = vector.shape_cast %8 : vector<8xf32> to vector<8x1xf32>
    %cst_3 = arith.constant 3.200000e+01 : f32
    %10 = vector.broadcast %cst_3 : f32 to vector<8x1xf32>
    %11 = arith.divf %9, %10 : vector<8x1xf32>
    %cst_4 = arith.constant 9.99999997E-7 : f32
    %12 = vector.broadcast %cst_4 : f32 to vector<8x1xf32>
    %13 = arith.addf %11, %12 : vector<8x1xf32>
    %14 = math.rsqrt %13 : vector<8x1xf32>
    %15 = vector.broadcast %14 : vector<8x1xf32> to vector<8x32xf32>
    %16 = arith.mulf %6, %15 : vector<8x32xf32>
    %c0_5 = arith.constant 0 : index
    %c0_6 = arith.constant 0 : index
    %17 = vector.load %arg2[%c0_5, %c0_6] : memref<1x32xf32, #tpu.memory_space<vmem>>, vector<1x32xf32>
    %18 = vector.broadcast %17 : vector<1x32xf32> to vector<8x32xf32>
    %19 = arith.mulf %16, %18 : vector<8x32xf32>
    %c0_7 = arith.constant 0 : index
    %c0_8 = arith.constant 0 : index
    %20 = vector.load %arg3[%c0_7, %c0_8] : memref<1x32xf32, #tpu.memory_space<vmem>>, vector<1x32xf32>
    %21 = vector.broadcast %20 : vector<1x32xf32> to vector<8x32xf32>
    %22 = arith.addf %19, %21 : vector<8x32xf32>
    %23 = arith.truncf %22 : vector<8x32xf32> to vector<8x32xbf16>
    %c0_9 = arith.constant 0 : index
    %c0_10 = arith.constant 0 : index
    %24 = vector.load %arg4[%c0_9, %c0_10] : memref<32x32xbf16, #tpu.memory_space<vmem>>, vector<32x32xbf16>
    %cst_11 = arith.constant dense<0.000000e+00> : vector<8x32xf32>
    %25 = tpu.matmul %23, %24, %cst_11 {dimension_numbers = #tpu.dot_dimension_numbers<[1], [0], [0], [1], [0, 0, 1, 1], [], []>} : vector<8x32xbf16>, vector<32x32xbf16>, vector<8x32xf32> -> vector<8x32xf32>
    %c0_12 = arith.constant 0 : index
    %c0_13 = arith.constant 0 : index
    %26 = vector.load %arg5[%c0_12, %c0_13] : memref<1x32xf32, #tpu.memory_space<vmem>>, vector<1x32xf32>
    %27 = vector.broadcast %26 : vector<1x32xf32> to vector<8x32xf32>
    %28 = arith.addf %25, %27 : vector<8x32xf32>
    %c8_i32 = arith.constant 8 : i32
    %29 = arith.muli %arg0, %c8_i32 : i32
    %c0_14 = arith.constant 0 : index
    %30 = memref.load %arg1[%c0_14] : memref<1xi32, #tpu.memory_space<smem>>
    %31 = tpu.iota {dimensions = array<i32: 0>} : vector<8x32xi32>
    %32 = tpu.iota {dimensions = array<i32: 1>} : vector<8x32xi32>
    %33 = vector.broadcast %29 : i32 to vector<8x32xi32>
    %34 = arith.addi %31, %33 : vector<8x32xi32>
    %c32_i32 = arith.constant 32 : i32
    %35 = vector.broadcast %c32_i32 : i32 to vector<8x32xi32>
    %36 = arith.muli %34, %35 : vector<8x32xi32>
    %37 = arith.addi %36, %32 : vector<8x32xi32>
    %c-1640531527_i32 = arith.constant -1640531527 : i32
    %38 = arith.muli %30, %c-1640531527_i32 : i32
    %39 = vector.broadcast %38 : i32 to vector<8x32xi32>
    %40 = arith.xori %37, %39 : vector<8x32xi32>
    %c16_i32 = arith.constant 16 : i32
    %41 = vector.broadcast %c16_i32 : i32 to vector<8x32xi32>
    %42 = arith.shrui %40, %41 : vector<8x32xi32>
    %43 = arith.xori %40, %42 : vector<8x32xi32>
    %c2146121005_i32 = arith.constant 2146121005 : i32
    %44 = vector.broadcast %c2146121005_i32 : i32 to vector<8x32xi32>
    %45 = arith.muli %43, %44 : vector<8x32xi32>
    %c15_i32 = arith.constant 15 : i32
    %46 = vector.broadcast %c15_i32 : i32 to vector<8x32xi32>
    %47 = arith.shrui %45, %46 : vector<8x32xi32>
    %48 = arith.xori %45, %47 : vector<8x32xi32>
    %c-2073254261_i32 = arith.constant -2073254261 : i32
    %49 = vector.broadcast %c-2073254261_i32 : i32 to vector<8x32xi32>
    %50 = arith.muli %48, %49 : vector<8x32xi32>
    %c16_i32_15 = arith.constant 16 : i32
    %51 = vector.broadcast %c16_i32_15 : i32 to vector<8x32xi32>
    %52 = arith.shrui %50, %51 : vector<8x32xi32>
    %53 = arith.xori %50, %52 : vector<8x32xi32>
    %c8_i32_16 = arith.constant 8 : i32
    %54 = vector.broadcast %c8_i32_16 : i32 to vector<8x32xi32>
    %55 = arith.shrui %53, %54 : vector<8x32xi32>
    %c1677722_i32 = arith.constant 1677722 : i32
    %56 = vector.broadcast %c1677722_i32 : i32 to vector<8x32xi32>
    %57 = arith.cmpi sge, %55, %56 : vector<8x32xi32>
    %cst_17 = arith.constant 1.11111116 : f32
    %58 = vector.broadcast %cst_17 : f32 to vector<8x32xf32>
    %59 = arith.mulf %28, %58 : vector<8x32xf32>
    %cst_18 = arith.constant 0.000000e+00 : f32
    %60 = vector.broadcast %cst_18 : f32 to vector<8x32xf32>
    %61 = arith.select %57, %59, %60 : vector<8x32xi1>, vector<8x32xf32>
    %c0_19 = arith.constant 0 : index
    %c0_20 = arith.constant 0 : index
    %62 = vector.load %arg6[%c0_19, %c0_20] : memref<8x32xf32, #tpu.memory_space<vmem>>, vector<8x32xf32>
    %63 = arith.addf %62, %61 : vector<8x32xf32>
    %c0_21 = arith.constant 0 : index
    %c0_22 = arith.constant 0 : index
    %64 = vector.load %arg7[%c0_21, %c0_22] : memref<8x32xf32, #tpu.memory_space<vmem>>, vector<8x32xf32>
    tpu.vector_store %arg7[%c0_21, %c0_22], %63 {strides = array<i32>} : memref<8x32xf32, #tpu.memory_space<vmem>>, vector<8x32xf32>,
    return
  }
  func.func @transform_0(%arg0: i32, %arg1: memref<1xi32, #tpu.memory_space<smem>>) -> (i32, i32) {
    %c0_i32 = arith.constant 0 : i32
    %c0_i32_0 = arith.constant 0 : i32
    %c0_i32_1 = arith.constant 0 : i32
    return %c0_i32, %c0_i32_0 : i32, i32
  }
  func.func @transform_1(%arg0: i32, %arg1: memref<1xi32, #tpu.memory_space<smem>>) -> (i32, i32) {
    %c0_i32 = arith.constant 0 : i32
    %c0_i32_0 = arith.constant 0 : i32
    %c0_i32_1 = arith.constant 0 : i32
    return %c0_i32, %c0_i32_0 : i32, i32
  }
  func.func @transform_2(%arg0: i32, %arg1: memref<1xi32, #tpu.memory_space<smem>>) -> (i32, i32) {
    %c0_i32 = arith.constant 0 : i32
    %c0_i32_0 = arith.constant 0 : i32
    %c0_i32_1 = arith.constant 0 : i32
    return %c0_i32, %c0_i32_0 : i32, i32
  }
  func.func @transform_3(%arg0: i32, %arg1: memref<1xi32, #tpu.memory_space<smem>>) -> (i32, i32) {
    %c0_i32 = arith.constant 0 : i32
    %c0_i32_0 = arith.constant 0 : i32
    %c0_i32_1 = arith.constant 0 : i32
    return %c0_i32, %c0_i32_0 : i32, i32
  }
  func.func @transform_4(%arg0: i32, %arg1: memref<1xi32, #tpu.memory_space<smem>>) -> (i32, i32) {
    %c0_i32 = arith.constant 0 : i32
    %c0_i32_0 = arith.constant 0 : i32
    return %arg0, %c0_i32 : i32, i32
  }
  func.func @transform_5(%arg0: i32, %arg1: memref<1xi32, #tpu.memory_space<smem>>) -> (i32, i32) {
    %c0_i32 = arith.constant 0 : i32
    %c0_i32_0 = arith.constant 0 : i32
    return %arg0, %c0_i32 : i32, i32
  }
}

</mosaic_0001>

<llo_original>
// kernel: tpu_custom_call.1
$region0: #{tpu_custom_call.1}
  #allocation0 [shape = 'u32[]', space=smem, size = 0x4, offset = 0x4, fixed_abs, tag = 'smem constant byte address 0x4 - core index']
  #allocation1 [shape = 'u32[72,128]{1,0:T(1,128)}', space=vmem, size = 0x9000, scoped, tag = 'internal scratch']
  #allocation2 [shape = 's32[1]{0}', space=sflag, size = 0x4, scoped, tag = 'scoped memory for tpu_custom_call.1']
  #allocation3 [shape = 's32[1]{0:T(128)S(6)}', space=smem, size = 0x200, scoped, tag = 'prefetched SMEM operand 0']
  %s0 = inlined_call_operand.<no memory space> [shape: s32[1], index: 0, kind: input, shape index: {}]
  %s1 = inlined_call_operand.vmem [shape: f32[1,32], index: 1, kind: input, shape index: {}]
  %s2 = inlined_call_operand.vmem [shape: f32[1,32], index: 2, kind: input, shape index: {}]
  %s3 = inlined_call_operand.hbm [shape: bf16[32,32], index: 3, kind: input, shape index: {}]
  %s4 = inlined_call_operand.vmem [shape: f32[1,32], index: 4, kind: input, shape index: {}]
  %s5 = inlined_call_operand.hbm [shape: f32[16,32], index: 5, kind: input, shape index: {}]
  %s6 = inlined_call_operand.hbm [shape: f32[16,32], index: 6, kind: output, shape index: {}]
  %s7 = sld [smem:[#allocation0]]
  $region61: #{tpu_custom_call.1} parent=0
    _
  %s9 = ssub.s32 1, %s7
  %s10 = scalar_select 0, %s9, %s7
  %11 = sst [smem:[#allocation3]] %s0
  $region1: #{tpu_custom_call.1} parent=0
    #allocation4 [shape = 'u8[8192]{0}', space=vmem, size = 0x2000, scoped, tag = 'input window, operand 3, single buffered']
    #allocation5 [shape = 's32[2]{0}', space=sflag, size = 0x8, scoped, tag = 'scoped memory for tpu_custom_call.1']
    #allocation6 [shape = 's32[2]{0}', space=sflag, size = 0x8, scoped, tag = 'scoped memory for tpu_custom_call.1']
    #allocation7 [shape = 'u8[8192]{0}', space=vmem, size = 0x2000, scoped, tag = 'input window, operand 5']
    #allocation8 [shape = 's32[2]{0}', space=sflag, size = 0x8, scoped, tag = 'scoped memory for tpu_custom_call.1']
    #allocation9 [shape = 'u8[8192]{0}', space=vmem, size = 0x2000, scoped, tag = 'output window, operand 0']
    %12 = vsyncpa [#allocation5], 0
    %13 = vsyncpa [#allocation8], 0
    %s14 = scalar_lea.sflag [#allocation8], 1
    %15 = vsyncpa %s14, 0
    %16 = vsyncpa [#allocation6], 0
    %s17 = scalar_lea.sflag [#allocation6], 1
    %18 = vsyncpa %s17, 0
    loop: start=0, step=1, limit=4
    $region2: #{tpu_custom_call.1} parent=1 // loop_pre_header
      _
    $region3: #{tpu_custom_call.1} parent=1 // loop_header
      %s20 = sphi 0, %s24
      %p21 = scmp.ge.s32.totalorder %s20, 4
      %s28 = sphi 0, %s28
      %s30 = sphi 0, %s28
      %s31 = sphi 0, %s30
      %s45 = sphi 0, %s31
      %s49 = sphi 0, %s49
      %s51 = sphi 0, %s49
      %s52 = sphi 0, %s51
      %s66 = sphi 0, %s52
      %s70 = sphi 0, %s70
      %s72 = sphi 0, %s70
      %s73 = sphi 0, %s72
      %s87 = sphi 0, %s73
      %s91 = sphi 0, %s91
      %s93 = sphi 0, %s91
      %s94 = sphi 0, %s93
      %s108 = sphi 0, %s94
      %s114 = sphi 0, %s116
      %s117 = sphi 0, %s114
      %s118 = sphi 0, %s117
      %s134 = sphi 0, %s118
      %s140 = sphi 0, %s142
      %s143 = sphi 0, %s140
      %s144 = sphi 0, %s143
      %s160 = sphi 0, %s144
    $region4: #{tpu_custom_call.1} parent=1 // loop_header_branch
      %23 = sbr.rel (%p21) target = $region8
    $region5: #{tpu_custom_call.1} parent=1 // loop_body
      %s25 = ssub.s32 %s20, 1
      %s26 = ssub.s32 %s20, 2
      %s27 = sadd.s32 %s20, 1
      %s29 = sadd.s32 %s28, 1
      %p32 = scmp.eq.s32.totalorder %s20, 1
      %p33 = scmp.ne.s32.totalorder %s28, %s30
      %p34 = scmp.eq.s32.totalorder %s20, 0
      %p35 = por %p33, %p34
      %p36 = scmp.ne.s32.totalorder %s28, %s30
      %p37 = scmp.eq.s32.totalorder %s25, 1
      %p38 = por %p36, %p37
      %p39 = scmp.ne.s32.totalorder %s30, %s31
      %p40 = scmp.eq.s32.totalorder %s25, 0
      %p41 = por %p39, %p40
      %p42 = scmp.ne.s32.totalorder %s30, %s31
      %p43 = scmp.eq.s32.totalorder %s26, 1
      %p44 = por %p42, %p43
      %p46 = scmp.ne.s32.totalorder %s31, %s45
      %p47 = scmp.eq.s32.totalorder %s26, 0
      %p48 = por %p46, %p47
      %s50 = sadd.s32 %s49, 1
      %p53 = scmp.eq.s32.totalorder %s20, 1
      %p54 = scmp.ne.s32.totalorder %s49, %s51
      %p55 = scmp.eq.s32.totalorder %s20, 0
      %p56 = por %p54, %p55
      %p57 = scmp.ne.s32.totalorder %s49, %s51
      %p58 = scmp.eq.s32.totalorder %s25, 1
      %p59 = por %p57, %p58
      %p60 = scmp.ne.s32.totalorder %s51, %s52
      %p61 = scmp.eq.s32.totalorder %s25, 0
      %p62 = por %p60, %p61
      %p63 = scmp.ne.s32.totalorder %s51, %s52
      %p64 = scmp.eq.s32.totalorder %s26, 1
      %p65 = por %p63, %p64
      %p67 = scmp.ne.s32.totalorder %s52, %s66
      %p68 = scmp.eq.s32.totalorder %s26, 0
      %p69 = por %p67, %p68
      %s71 = sadd.s32 %s70, 1
      %p74 = scmp.eq.s32.totalorder %s20, 1
      %p75 = scmp.ne.s32.totalorder %s70, %s72
      %p76 = scmp.eq.s32.totalorder %s20, 0
      %p77 = por %p75, %p76
      %p78 = scmp.ne.s32.totalorder %s70, %s72
      %p79 = scmp.eq.s32.totalorder %s25, 1
      %p80 = por %p78, %p79
      %p81 = scmp.ne.s32.totalorder %s72, %s73
      %p82 = scmp.eq.s32.totalorder %s25, 0
      %p83 = por %p81, %p82
      %p84 = scmp.ne.s32.totalorder %s72, %s73
      %p85 = scmp.eq.s32.totalorder %s26, 1
      %p86 = por %p84, %p85
      %p88 = scmp.ne.s32.totalorder %s73, %s87
      %p89 = scmp.eq.s32.totalorder %s26, 0
      %p90 = por %p88, %p89
      %s92 = sadd.s32 %s91, 1
      %p95 = scmp.eq.s32.totalorder %s20, 1
      %p96 = scmp.ne.s32.totalorder %s91, %s93
      %p97 = scmp.eq.s32.totalorder %s20, 0
      %p98 = por %p96, %p97
      %p99 = scmp.ne.s32.totalorder %s91, %s93
      %p100 = scmp.eq.s32.totalorder %s25, 1
      %p101 = por %p99, %p100
      %p102 = scmp.ne.s32.totalorder %s93, %s94
      %p103 = scmp.eq.s32.totalorder %s25, 0
      %p104 = por %p102, %p103
      %p105 = scmp.ne.s32.totalorder %s93, %s94
      %p106 = scmp.eq.s32.totalorder %s26, 1
      %p107 = por %p105, %p106
      %p109 = scmp.ne.s32.totalorder %s94, %s108
      %p110 = scmp.eq.s32.totalorder %s26, 0
      %p111 = por %p109, %p110
      %s112 = ssub.s32 %s20, %s27
      %p113 = scmp.eq.s32.totalorder %s112, 0
      %s115 = sadd.s32 %s114, 1
      %s116 = scalar_select %p113, %s114, %s115
      %p119 = pneg %p113
      %p120 = scmp.eq.s32.totalorder %s20, 1
      %p121 = por %p119, %p120
      %p122 = scmp.ne.s32.totalorder %s114, %s117
      %p123 = scmp.eq.s32.totalorder %s20, 0
      %p124 = por %p122, %p123
      %p125 = scmp.ne.s32.totalorder %s114, %s117
      %p126 = scmp.eq.s32.totalorder %s25, 1
      %p127 = por %p125, %p126
      %p128 = scmp.ne.s32.totalorder %s117, %s118
      %p129 = scmp.eq.s32.totalorder %s25, 0
      %p130 = por %p128, %p129
      %p131 = scmp.ne.s32.totalorder %s117, %s118
      %p132 = scmp.eq.s32.totalorder %s26, 1
      %p133 = por %p131, %p132
      %p135 = scmp.ne.s32.totalorder %s118, %s134
      %p136 = scmp.eq.s32.totalorder %s26, 0
      %p137 = por %p135, %p136
      %s138 = ssub.s32 %s20, %s27
      %p139 = scmp.eq.s32.totalorder %s138, 0
      %s141 = sadd.s32 %s140, 1
      %s142 = scalar_select %p139, %s140, %s141
      %p145 = pneg %p139
      %p146 = scmp.eq.s32.totalorder %s20, 1
      %p147 = por %p145, %p146
      %p148 = scmp.ne.s32.totalorder %s140, %s143
      %p149 = scmp.eq.s32.totalorder %s20, 0
      %p150 = por %p148, %p149
      %p151 = scmp.ne.s32.totalorder %s140, %s143
      %p152 = scmp.eq.s32.totalorder %s25, 1
      %p153 = por %p151, %p152
      %p154 = scmp.ne.s32.totalorder %s143, %s144
      %p155 = scmp.eq.s32.totalorder %s25, 0
      %p156 = por %p154, %p155
      %p157 = scmp.ne.s32.totalorder %s143, %s144
      %p158 = scmp.eq.s32.totalorder %s26, 1
      %p159 = por %p157, %p158
      %p161 = scmp.ne.s32.totalorder %s144, %s160
      %p162 = scmp.eq.s32.totalorder %s26, 0
      %p163 = por %p161, %p162
      %p164 = scmp.le.s32.totalorder 1, %s20
      %p165 = scmp.lt.s32.totalorder %s20, 3
      %p166 = pnand %p164, %p165
      %p167 = pneg %p166
      // Predicated region
      $region9: #{tpu_custom_call.1} parent=5 // pred_check
        _
      $region10: #{tpu_custom_call.1} parent=5 // pred_check_branch
        %169 = sbr.rel (%p166) target = $region12
      $region11: #{tpu_custom_call.1} parent=5 // pred_region
        %s170 = ssub.s32 %s20, 1
        // Predicated region
        $region13: #{tpu_custom_call.1} parent=11 // pred_check
          %p171 = pneg %p41
        $region14: #{tpu_custom_call.1} parent=11 // pred_check_branch
          %173 = sbr.rel (%p171) target = $region16
        $region15: #{tpu_custom_call.1} parent=11 // pred_region
          _
        $region16: #{tpu_custom_call.1} parent=11 // pred_fallthru
          _
        // Predicated region
        $region17: #{tpu_custom_call.1} parent=11 // pred_check
          %p174 = pneg %p62
        $region18: #{tpu_custom_call.1} parent=11 // pred_check_branch
          %176 = sbr.rel (%p174) target = $region20
        $region19: #{tpu_custom_call.1} parent=11 // pred_region
          _
        $region20: #{tpu_custom_call.1} parent=11 // pred_fallthru
          _
        // Predicated region
        $region21: #{tpu_custom_call.1} parent=11 // pred_check
          %p177 = pneg %p83
        $region22: #{tpu_custom_call.1} parent=11 // pred_check_branch
          %179 = sbr.rel (%p177) target = $region24
        $region23: #{tpu_custom_call.1} parent=11 // pred_region
          %181 = vsyncadd [#allocation5], 0
          %s182 = sshll.u32 %s3, 4
          %s183 = int_to_ptr.hbm [resolvable:$true] %s182
          %s184 = sshll.u32 [#allocation4], 4
          %s185 = int_to_ptr.vmem [resolvable:$true] %s184
          %190 = dma.hbm_to_vmem [thread:$0]  %s183, 256, %s185, [#allocation5], 64, 64, 4
        $region24: #{tpu_custom_call.1} parent=11 // pred_fallthru
          _
        // Predicated region
        $region25: #{tpu_custom_call.1} parent=11 // pred_check
          %p191 = pneg %p104
        $region26: #{tpu_custom_call.1} parent=11 // pred_check_branch
          %193 = sbr.rel (%p191) target = $region28
        $region27: #{tpu_custom_call.1} parent=11 // pred_region
          _
        $region28: #{tpu_custom_call.1} parent=11 // pred_fallthru
          _
      $region12: #{tpu_custom_call.1} parent=5 // pred_fallthru
        _
      %p194 = scmp.lt.s32.totalorder %s20, 2
      // Predicated region
      $region29: #{tpu_custom_call.1} parent=5 // pred_check
        %p195 = pneg %p194
      $region30: #{tpu_custom_call.1} parent=5 // pred_check_branch
        %197 = sbr.rel (%p195) target = $region32
      $region31: #{tpu_custom_call.1} parent=5 // pred_region
        // Predicated region
        $region33: #{tpu_custom_call.1} parent=31 // pred_check
          %p198 = pneg %p124
        $region34: #{tpu_custom_call.1} parent=31 // pred_check_branch
          %200 = sbr.rel (%p198) target = $region36
        $region35: #{tpu_custom_call.1} parent=31 // pred_region
          %s201 = sand.u32 %s114, 1
          %s202 = scalar_lea.sflag [#allocation8], %s201
          %s203 = sand.u32 %s114, 1
          %s204 = smul.addr %s203, 8
          %s205 = scalar_lea.vmem [#allocation7], %s204
          %207 = vsyncadd %s202, 0
          %s208 = smul.addr %s20, 8
          %s209 = scalar_lea.hbm %s5, %s208
          %s211 = sshll.u32 %s209, 4
          %s212 = int_to_ptr.hbm [resolvable:$true] %s211
          %s213 = sshll.u32 %s205, 4
          %s214 = int_to_ptr.vmem [resolvable:$true] %s213
          %216 = dma.hbm_to_vmem [thread:$0]  %s212, 128, %s214, %s202
        $region36: #{tpu_custom_call.1} parent=31 // pred_fallthru
          _
      $region32: #{tpu_custom_call.1} parent=5 // pred_fallthru
        _
      %p217 = scmp.le.s32.totalorder 1, %s20
      %p218 = scmp.lt.s32.totalorder %s20, 3
      %p219 = pnand %p217, %p218
      %p220 = pneg %p219
      // Predicated region
      $region37: #{tpu_custom_call.1} parent=5 // pred_check
        _
      $region38: #{tpu_custom_call.1} parent=5 // pred_check_branch
        %222 = sbr.rel (%p219) target = $region40
      $region39: #{tpu_custom_call.1} parent=5 // pred_region
        %s223 = ssub.s32 %s20, 1
        // Predicated region
        $region41: #{tpu_custom_call.1} parent=39 // pred_check
          %p224 = pneg %p83
        $region42: #{tpu_custom_call.1} parent=39 // pred_check_branch
          %226 = sbr.rel (%p224) target = $region44
        $region43: #{tpu_custom_call.1} parent=39 // pred_region
          %228 = dma.done [#allocation5], 256
        $region44: #{tpu_custom_call.1} parent=39 // pred_fallthru
          _
        %s229 = sand.u32 %s117, 1
        %s230 = scalar_lea.sflag [#allocation8], %s229
        %s231 = sand.u32 %s117, 1
        %s232 = smul.addr %s231, 8
        %s233 = scalar_lea.vmem [#allocation7], %s232
        // Predicated region
        $region45: #{tpu_custom_call.1} parent=39 // pred_check
          %p234 = pneg %p130
        $region46: #{tpu_custom_call.1} parent=39 // pred_check_branch
          %236 = sbr.rel (%p234) target = $region48
        $region47: #{tpu_custom_call.1} parent=39 // pred_region
          %238 = dma.done %s230, 128
        $region48: #{tpu_custom_call.1} parent=39 // pred_fallthru
          _
        %p239 = pneg %p41
        %p240 = pneg %p38
        %p241 = pneg %p62
        %p242 = pneg %p59
        %p243 = pneg %p83
        %p244 = pneg %p80
        %p245 = pneg %p104
        %p246 = pneg %p101
        %s247 = sand.u32 %s117, 1
        %s248 = scalar_lea.sflag [#allocation8], %s247
        %s249 = sand.u32 %s117, 1
        %s250 = smul.addr %s249, 8
        %s251 = scalar_lea.vmem [#allocation7], %s250
        %p252 = pneg %p130
        %p253 = pneg %p127
        %p254 = pneg %p156
        %p255 = pneg %p153
        %s256 = sand.u32 %s143, 1
        %s257 = scalar_lea.sflag [#allocation6], %s256
        %s258 = sand.u32 %s143, 1
        %s259 = smul.addr %s258, 8
        %s260 = scalar_lea.vmem [#allocation9], %s259
        %v262 = vld [vmem:[%s233] sm:$0xff]
        %vm263 = vcmask 261120
        %v264 = vsel %vm263, %v262, 0.0
        %265 = vadd.xlane.f32.xlu0 %v264
        %v266 = vpop.xlane.xlu0 %265
        %v267 = vrcp.pop 32.0
        %v268 = vmul.f32 32.0, %v267
        %v269 = vsub.f32 1.0, %v268
        %v270 = vmul.f32 %v267, %v269
        %v271 = vadd.f32 %v267, %v270
        %vm272 = vweird.f32 %v267
        %v273 = vsel %vm272, %v267, %v271
        %v274 = vmul.f32 %v266, %v273
        %v275 = vsub.f32 %v262, %v274
        %v276 = vmul.f32 %v275, %v275
        %v277 = vsel %vm263, %v276, 0.0
        %278 = vadd.xlane.f32.xlu0 %v277
        %v279 = vpop.xlane.xlu0 %278
        %v280 = vmul.f32 %v279, %v273
        %v281 = vadd.f32 %v280, 1e-06
        %v282 = vrsqrt.pop %v281
        %v283 = vmul.f32 %v282, %v281
        %v284 = vmul.f32 %v283, %v282
        %v285 = vmul.f32 0.5, %v284
        %v286 = vsub.f32 1.5, %v285
        %v287 = vmul.f32 %v282, %v286
        %vm288 = vweird.f32 %v281
        %vm289 = vweird.f32 %v282
        %vm290 = vmor %vm288, %vm289
        %v291 = vsel %vm290, %v282, %v287
        %v292 = vmul.f32 %v275, %v291
        %v293 = vld [vmem:[%s1] sm:$0x1]
        %v295 = vperm.slane %v293, 0
        %v297 = vmul.f32 %v292, %v295
        %v298 = vld [vmem:[%s2] sm:$0x1]
        %v300 = vperm.slane %v298, 0
        %v302 = vadd.f32 %v297, %v300
        %v303 = vpack.c.bf16 %v302, %v302
        %v304 = vld [vmem:[#allocation4] sm:$0xf]
        %v305 = vld [vmem:[#allocation4 + $0x4] sm:$0xf]
        %v306 = vld [vmem:[#allocation4 + $0x8] sm:$0xf]
        %v307 = vld [vmem:[#allocation4 + $0xc] sm:$0xf]
        %v308 = vld [vmem:[%s4] sm:$0x1]
        %v310 = vperm.slane %v308, 0
        %v316 = vunpack.c.l.b16 %v304
        %v317 = vunpack.c.l.b16 %v305
        %v318 = vunpack.c.l.b16 %v306
        %v319 = vunpack.c.l.b16 %v307
        %v320 = vpack.c.b16 %v317, %v316
        %v321 = vpack.c.b16 %v319, %v318
        %v325 = vsel %vm263, %v303, 0
        %327 = vmatpush.bf16.msra.mxu0 0
        %328 = vmatpush.bf16.msra.mxu0 0
        %329 = vmatpush.bf16.msra.mxu0 0
        %330 = vmatpush.bf16.msra.mxu0 0
        %331 = vmatpush.bf16.msra.mxu0 0
        %332 = vmatpush.bf16.msra.mxu0 0
        %333 = vmatpush.bf16.msra.mxu0 %v321
        %334 = vmatpush.bf16.msra.mxu0 %v320
        %335 = vmatmul.bf16.gmra.mxu0 %v325
        %v336 = vpop.f32.mrf.mxu0
        %v337 = vadd.f32 %v310, %v336
        %v338 = vpop.f32.mrf.mxu0
        %339 = vdwg.mxu0
        %s340 = smul.u32 %s25, 8
        %s341 = sld [smem:[#allocation3]]
        %v342 = vlaneseq
        %v343 = vshrl.u32 %v342, 7
        %v344 = vlaneseq
        %v345 = vand.u32 %v344, 127
        %v346 = vstv %s340
        %v347 = vadd.s32 %v343, %v346
        %v348 = vmul.u32 %v347, 32
        %v349 = vadd.s32 %v348, %v345
        %s350 = smul.u32 %s341, 2654435769
        %v351 = vstv %s350
        %v352 = vxor.u32 %v349, %v351
        %v353 = vshrl.u32 %v352, 16
        %v354 = vxor.u32 %v352, %v353
        %v355 = vmul.u32 %v354, 2146121005
        %v356 = vshrl.u32 %v355, 15
        %v357 = vxor.u32 %v355, %v356
        %v358 = vmul.u32 %v357, 2221713035
        %v359 = vshrl.u32 %v358, 16
        %v360 = vxor.u32 %v358, %v359
        %v361 = vshrl.u32 %v360, 8
        %vm362 = vcmp.ge.s32.totalorder %v361, 1677722
        %v363 = vmul.f32 %v337, 1.1111112
        %v364 = vsel %vm362, %v363, 0.0
        %v365 = vadd.f32 %v262, %v364
        %366 = vst.msk [vmem:[%s260] sm:$0xff] %vm263, %v365
        %s367 = sand.u32 %s143, 1
        %s368 = scalar_lea.sflag [#allocation6], %s367
        %s369 = sand.u32 %s143, 1
        %s370 = smul.addr %s369, 8
        %s371 = scalar_lea.vmem [#allocation9], %s370
        // Predicated region
        $region49: #{tpu_custom_call.1} parent=39 // pred_check
          %p372 = pneg %p153
        $region50: #{tpu_custom_call.1} parent=39 // pred_check_branch
          %374 = sbr.rel (%p372) target = $region52
        $region51: #{tpu_custom_call.1} parent=39 // pred_region
          %376 = vsyncadd %s368, 0
          %s377 = smul.addr %s25, 8
          %s378 = scalar_lea.hbm %s6, %s377
          %s380 = sshll.u32 %s371, 4
          %s381 = int_to_ptr.vmem [resolvable:$true] %s380
          %s382 = sshll.u32 %s378, 4
          %s383 = int_to_ptr.hbm [resolvable:$true] %s382
          %385 = dma.vmem_to_hbm [thread:$0]  %s381, 128, %s383, %s368
        $region52: #{tpu_custom_call.1} parent=39 // pred_fallthru
          _
      $region40: #{tpu_custom_call.1} parent=5 // pred_fallthru
        _
      %p386 = scmp.le.s32.totalorder 2, %s20
      // Predicated region
      $region53: #{tpu_custom_call.1} parent=5 // pred_check
        %p387 = pneg %p386
      $region54: #{tpu_custom_call.1} parent=5 // pred_check_branch
        %389 = sbr.rel (%p387) target = $region56
      $region55: #{tpu_custom_call.1} parent=5 // pred_region
        %s390 = ssub.s32 %s20, 2
        // Predicated region
        $region57: #{tpu_custom_call.1} parent=55 // pred_check
          %p391 = pneg %p159
        $region58: #{tpu_custom_call.1} parent=55 // pred_check_branch
          %393 = sbr.rel (%p391) target = $region60
        $region59: #{tpu_custom_call.1} parent=55 // pred_region
          %s394 = sand.u32 %s144, 1
          %s395 = scalar_lea.sflag [#allocation6], %s394
          %s396 = sand.u32 %s144, 1
          %s397 = smul.addr %s396, 8
          %s398 = scalar_lea.vmem [#allocation9], %s397
          %400 = dma.done %s395, 128
        $region60: #{tpu_custom_call.1} parent=55 // pred_fallthru
          _
      $region56: #{tpu_custom_call.1} parent=5 // pred_fallthru
        _
    $region6: #{tpu_custom_call.1} parent=1 // loop_footer
      %s24 = sadd.s32 1, %s20
    $region7: #{tpu_custom_call.1} parent=1 // loop_footer_branch
      %19 = sbr.rel target = $region3
    $region8: #{tpu_custom_call.1} parent=1 // loop_exit
      _
    %401 = vsyncpa [#allocation5], 1
    %s402 = scalar_lea.sflag [#allocation5], 1
    %403 = vsyncpa %s402, 1
    %404 = vsyncpa [#allocation8], 1
    %s405 = scalar_lea.sflag [#allocation8], 1
    %406 = vsyncpa %s405, 1
    %407 = vsyncpa [#allocation6], 1
    %s408 = scalar_lea.sflag [#allocation6], 1
    %409 = vsyncpa %s408, 1

</llo_original>
